<compile_context>
chip_gen: v7x
topology: tpu7x:2x2x1
jax: 0.10.0
libtpu: 0.0.40
codegen_flags: <defaults>
</compile_context>

<pallas_src>
import functools

import jax
import jax.numpy as jnp
from jax import lax
from jax.experimental import pallas as pl
from jax.experimental.pallas import tpu as pltpu


def _wce_kernel(pred_ref, gold_ref, weight_ref, clssw_ref, bd0_ref, out_ref, *,
                num_classes, num_clss_weights, tile_b, tile_h, chunk,
                one_hot_gold):
    """One (batch-tile, row-tile) block.

    pred_ref / gold_ref : (tile_b, C, tile_h, W)       VMEM
    weight_ref          : (tile_b, tile_h, W)           VMEM (channel squeezed)
    clssw_ref           : (bs * num_clss_weights,)      SMEM (flattened)
    bd0_ref             : (bs,)                         SMEM (1 + alpha*bd0)
    out_ref             : (1, 1, out_rows, W)           VMEM lane-dense partial
    """
    b0 = pl.program_id(0) * tile_b            # batch base for SMEM lookups
    n_chunks = tile_h // chunk
    out_rows = out_ref.shape[-2]
    W = out_ref.shape[-1]

    def chunk_body(bi, r_idx, acc):
        row = pl.multiple_of(r_idx * chunk, chunk)
        rows = pl.ds(row, chunk)

        # ---- fused channel loop over one (chunk, W) strip: argmax(pred),
        #      argmax(gold) and the CE sum, all state held in vregs.
        p = pred_ref[bi, 0, rows, :].astype(jnp.float32)
        g = gold_ref[bi, 0, rows, :].astype(jnp.float32)
        p_best = p
        p_idx = jnp.zeros(p.shape, jnp.int32)
        if one_hot_gold:
            p_at_gold = g * p
            g_idx_f = jnp.zeros(p.shape, jnp.float32)   # class 0 contributes 0
            ce = None
            g_idx = None
        else:
            g_best = g
            g_idx = jnp.zeros(p.shape, jnp.int32)
            ce = g * jnp.log(p + 1e-8)
        for c in range(1, num_classes):
            p = pred_ref[bi, c, rows, :].astype(jnp.float32)
            g = gold_ref[bi, c, rows, :].astype(jnp.float32)
            pgt = p > p_best                  # strict '>' => first-index ties
            p_idx = jnp.where(pgt, c, p_idx)
            p_best = jnp.where(pgt, p, p_best)
            if one_hot_gold:
                p_at_gold = p_at_gold + g * p
                g_idx_f = g_idx_f + jnp.float32(c) * g
            else:
                ggt = g > g_best
                g_idx = jnp.where(ggt, c, g_idx)
                g_best = jnp.where(ggt, g, g_best)
                ce = ce + g * jnp.log(p + 1e-8)
        if one_hot_gold:
            # Exact for strictly one-hot gold: sum_c g*log(p+eps) == log(p_gold+eps)
            ce = jnp.log(p_at_gold + 1e-8)
            g_idx = g_idx_f.astype(jnp.int32)

        # ---- class weight of the predicted class (classes 1..4, as in ref)
        wsel = jnp.zeros(p.shape, jnp.float32)
        for j in range(1, min(5, num_classes)):
            wsel = wsel + jnp.where(
                p_idx == j, clssw_ref[(b0 + bi) * num_clss_weights + j], 0.0)

        # FP/FN mask folded into the final select; bd0 pre-scaled in wrapper.
        w = weight_ref[bi, rows, :].astype(jnp.float32)
        misp = jnp.logical_and(p_idx != g_idx, wsel > 0.0)
        w_all = jnp.where(misp, bd0_ref[b0 + bi] * wsel, w)

        loss = -(w_all * ce)                  # (chunk, W)
        if chunk == out_rows:                 # chunk == 8: full-vreg accumulate
            return acc + loss
        return acc + jnp.sum(loss, axis=0, keepdims=True)

    acc = jnp.zeros((out_rows, W), jnp.float32)
    for bi in range(tile_b):                  # static, small
        acc = lax.fori_loop(0, n_chunks, functools.partial(chunk_body, bi), acc)
    out_ref[...] = acc.reshape(out_ref.shape)


def _pick_tiles(bs, H, W, bytes_per_pixel, budget_bytes, row_granule):
    """Choose (tile_b, tile_h) so one block of inputs stays under budget."""
    row_bytes = W * bytes_per_pixel
    plane_bytes = H * row_bytes
    if plane_bytes <= budget_bytes:
        # Small plane: span several batch elements per step.
        tile_b = 1
        for t in range(1, bs + 1):
            if bs % t == 0 and t * plane_bytes <= budget_bytes:
                tile_b = t
        return tile_b, H
    if H % row_granule != 0:
        # Fallback: whole plane per step (wrapper raises vmem_limit to match).
        return 1, H
    tile_h = row_granule
    for t in range(row_granule, H + 1, row_granule):
        if H % t == 0 and t * row_bytes <= budget_bytes:
            tile_h = t
    return 1, tile_h


def weighted_cross_entropy_loss(pred, gold, weight, clss_weight_list, bd0_dist,
                                alpha_s, *, one_hot_gold=False,
                                input_budget_bytes=12 * 1024 * 1024):
    """Forward of WeightedCrossEntropyLoss.

    Recommended usage: pass pred/gold/weight as bf16 (half the HBM traffic,
    the dominant cost on v5e); the kernel upcasts to f32 after the load, so
    the math matches the f32 reference.  Set one_hot_gold=True only when gold
    is strictly one-hot (enables the single-log CE fast path).
    """
    bs, C, H, W = pred.shape
    assert gold.shape == (bs, C, H, W)
    assert weight.shape == (bs, 1, H, W)
    ncw = clss_weight_list.shape[1]
    # NOTE: the PyTorch reference hardcodes classes 1..4 (and would fail for
    # C < 5); we clamp to min(5, C) instead.
    assert clss_weight_list.shape[0] == bs and ncw >= min(5, C)

    bytes_per_pixel = (C * pred.dtype.itemsize + C * gold.dtype.itemsize
                       + weight.dtype.itemsize)
    min_itemsize = min(pred.dtype.itemsize, gold.dtype.itemsize,
                       weight.dtype.itemsize)
    row_granule = 8 * max(1, 4 // min_itemsize)   # 8 f32 / 16 bf16 / 32 int8

    tile_b, tile_h = _pick_tiles(bs, H, W, bytes_per_pixel,
                                 input_budget_bytes, row_granule)
    chunk = 8 if tile_h % 8 == 0 else tile_h
    out_rows = 8 if chunk == 8 else 1
    n_gb = bs // tile_b
    n_gh = H // tile_h

    # Per-batch scalars in SMEM; bd0 pre-scaled so the kernel does one mul.
    clssw_flat = clss_weight_list.astype(jnp.float32).reshape(-1)
    bd0_b = 1.0 + jnp.float32(alpha_s) * jnp.asarray(bd0_dist, jnp.float32)

    # 32 MiB works on every generation (<= v7x's 64 MiB physical); only the
    # untileable-H fallback raises it, based on the actual block size.
    in_block_bytes = tile_b * tile_h * W * bytes_per_pixel
    vmem_limit = max(32 * 1024 * 1024, 2 * in_block_bytes + 8 * 1024 * 1024)
    vmem_limit = min(vmem_limit, 100 * 1024 * 1024)

    kernel = functools.partial(
        _wce_kernel, num_classes=C, num_clss_weights=ncw, tile_b=tile_b,
        tile_h=tile_h, chunk=chunk, one_hot_gold=one_hot_gold)

    partials = pl.pallas_call(
        kernel,
        out_shape=jax.ShapeDtypeStruct((n_gb, n_gh, out_rows, W), jnp.float32),
        grid_spec=pltpu.PrefetchScalarGridSpec(
            num_scalar_prefetch=0,
            grid=(n_gb, n_gh),
            in_specs=[
                pl.BlockSpec((tile_b, C, tile_h, W), lambda i, j: (i, 0, j, 0)),
                pl.BlockSpec((tile_b, C, tile_h, W), lambda i, j: (i, 0, j, 0)),
                pl.BlockSpec((tile_b, pl.Squeezed(), tile_h, W),
                             lambda i, j: (i, 0, j, 0)),
                pl.BlockSpec(memory_space=pltpu.MemorySpace.SMEM),  # clss weights
                pl.BlockSpec(memory_space=pltpu.MemorySpace.SMEM),  # 1+alpha*bd0
            ],
            out_specs=pl.BlockSpec((1, 1, out_rows, W),
                                   lambda i, j: (i, j, 0, 0)),
        ),
        compiler_params=pltpu.CompilerParams(
            dimension_semantics=("parallel", "parallel"),
            vmem_limit_bytes=vmem_limit,
        ),
    )(pred, gold, weight, clssw_flat, bd0_b)

    # Tiny final reduce over the lane-dense partials, then the mean.
    return jnp.sum(partials) / jnp.float32(bs * H * W)


def reference(pred, gold, weight, clssw, bd0_dist, alpha_s):
    """Pure-JAX mirror of the PyTorch forward (bd0 distances as input)."""
    pred_am = jnp.argmax(pred, axis=1, keepdims=True)
    gold_am = jnp.argmax(gold, axis=1, keepdims=True)
    mask = jnp.where(pred_am == gold_am, 0, 1)
    pred_fpfn = pred_am * mask
    bs, _, H, W = pred.shape
    wfpfn = jnp.zeros((bs, 1, H, W), jnp.float32)
    for j in [1, 2, 3, 4]:
        wfpfn = wfpfn + jnp.where(pred_fpfn == j,
                                  clssw[:, j][:, None, None, None], 0.0)
    bd0 = (1.0 + alpha_s * bd0_dist)[:, None, None, None]
    weight_all = jnp.where(wfpfn > 0, bd0 * wfpfn, weight)
    loss = -weight_all * jnp.sum(gold * jnp.log(pred + 1e-8), axis=1,
                                 keepdims=True)
    return jnp.mean(jnp.squeeze(loss))


if __name__ == "__main__":
    key = jax.random.PRNGKey(0)
    bs, C, H, W = 2, 5, 16, 128
    k1, k2, k3, k4, k5 = jax.random.split(key, 5)

    logits = jax.random.normal(k1, (bs, C, H, W), jnp.float32)
    pred = jax.nn.softmax(logits, axis=1)                      # probabilities
    gold_idx = jax.random.randint(k2, (bs, H, W), 0, C)
    gold = jax.nn.one_hot(gold_idx, C, axis=1, dtype=jnp.float32)
    weight = jax.random.uniform(k3, (bs, 1, H, W), jnp.float32, 0.5, 1.5)
    clss_weight_list = jax.random.uniform(k4, (bs, C), jnp.float32, 1.0, 3.0)
    bd0_dist = jax.random.uniform(k5, (bs,), jnp.float32, 0.0, 2.0)
    alpha_s = 0.1

    # 1) f32 inputs, batch-tiled path, exact (soft-label-safe) CE.
    out = weighted_cross_entropy_loss(pred, gold, weight, clss_weight_list,
                                      bd0_dist, alpha_s)
    out = jax.block_until_ready(out)
    ref = reference(pred, gold, weight, clss_weight_list, bd0_dist, alpha_s)
    assert jnp.allclose(out, ref, rtol=1e-5, atol=1e-5), (out, ref)

    # 2) bf16 inputs (recommended path) + one-hot-gold fast path.
    pred_h = pred.astype(jnp.bfloat16)
    gold_h = gold.astype(jnp.bfloat16)
    weight_h = weight.astype(jnp.bfloat16)
    out_h = weighted_cross_entropy_loss(pred_h, gold_h, weight_h,
                                        clss_weight_list, bd0_dist, alpha_s,
                                        one_hot_gold=True)
    out_h = jax.block_until_ready(out_h)
    ref_h = reference(pred_h.astype(jnp.float32), gold_h.astype(jnp.float32),
                      weight_h.astype(jnp.float32), clss_weight_list,
                      bd0_dist, alpha_s)
    assert jnp.allclose(out_h, ref_h, rtol=1e-5, atol=1e-5), (out_h, ref_h)

    # 3) Force the row-tiled multi-step grid (tiny budget) to exercise that path.
    out_t = weighted_cross_entropy_loss(pred, gold, weight, clss_weight_list,
                                        bd0_dist, alpha_s,
                                        input_budget_bytes=16 * 1024)
    out_t = jax.block_until_ready(out_t)
    assert jnp.allclose(out_t, ref, rtol=1e-5, atol=1e-5), (out_t, ref)

    print("KERNEL_OK")
</pallas_src>

<mosaic_0001>
module attributes {stable_mosaic.version = 11 : i64} {
  func.func @_wce_kernel(%arg0: i32, %arg1: i32, %arg2: memref<2x5x16x128xf32, #tpu.memory_space<vmem>>, %arg3: memref<2x5x16x128xf32, #tpu.memory_space<vmem>>, %arg4: memref<2x1x16x128xf32, #tpu.memory_space<vmem>>, %arg5: memref<10xf32, #tpu.memory_space<smem>>, %arg6: memref<2xf32, #tpu.memory_space<smem>>, %arg7: memref<1x1x8x128xf32, #tpu.memory_space<vmem>>) attributes {dimension_semantics = [#tpu.dimension_semantics<parallel>, #tpu.dimension_semantics<parallel>], iteration_bounds = array<i64: 1, 1>, scalar_prefetch = 0 : i64, scratch_operands = 0 : i64, tpu.core_type = #tpu.core_type<tc>, window_params = [{transform_indices = @transform_0, window_bounds = array<i64: 2, 5, 16, 128>}, {transform_indices = @transform_1, window_bounds = array<i64: 2, 5, 16, 128>}, {transform_indices = @transform_2, window_bounds = array<i64: 2, 1, 16, 128>}, {transform_indices = @transform_3, window_bounds = array<i64: 10>}, {transform_indices = @transform_4, window_bounds = array<i64: 2>}, {transform_indices = @transform_5, window_bounds = array<i64: 1, 1, 8, 128>}]} {
    %c2_i32 = arith.constant 2 : i32
    %0 = arith.muli %arg0, %c2_i32 : i32
    %cst = arith.constant 0.000000e+00 : f32
    %1 = vector.broadcast %cst : f32 to vector<8x128xf32>
    %c0_i32 = arith.constant 0 : i32
    %c2_i32_0 = arith.constant 2 : i32
    %2 = arith.addi %c0_i32, %c2_i32_0 : i32
    %c1_i32 = arith.constant 1 : i32
    %3 = scf.for %arg8 = %c0_i32 to %2 step %c1_i32 iter_args(%arg9 = %1) -> (vector<8x128xf32>)  : i32 {
      %c8_i32 = arith.constant 8 : i32
      %8 = arith.muli %arg8, %c8_i32 : i32
      %9 = tpu.assume_multiple %8, 8 : i32
      %c0_9 = arith.constant 0 : index
      %c0_10 = arith.constant 0 : index
      %10 = arith.index_cast %9 : i32 to index
      %c0_11 = arith.constant 0 : index
      %11 = vector.load %arg2[%c0_9, %c0_10, %10, %c0_11] : memref<2x5x16x128xf32, #tpu.memory_space<vmem>>, vector<1x1x8x128xf32>
      %12 = vector.shape_cast %11 : vector<1x1x8x128xf32> to vector<8x128xf32>
      %c0_12 = arith.constant 0 : index
      %c0_13 = arith.constant 0 : index
      %13 = arith.index_cast %9 : i32 to index
      %c0_14 = arith.constant 0 : index
      %14 = vector.load %arg3[%c0_12, %c0_13, %13, %c0_14] : memref<2x5x16x128xf32, #tpu.memory_space<vmem>>, vector<1x1x8x128xf32>
      %15 = vector.shape_cast %14 : vector<1x1x8x128xf32> to vector<8x128xf32>
      %c0_i32_15 = arith.constant 0 : i32
      %16 = vector.broadcast %c0_i32_15 : i32 to vector<8x128xi32>
      %c0_i32_16 = arith.constant 0 : i32
      %17 = vector.broadcast %c0_i32_16 : i32 to vector<8x128xi32>
      %cst_17 = arith.constant 9.99999993E-9 : f32
      %18 = vector.broadcast %cst_17 : f32 to vector<8x128xf32>
      %19 = arith.addf %12, %18 : vector<8x128xf32>
      %20 = math.log %19 : vector<8x128xf32>
      %21 = arith.mulf %15, %20 : vector<8x128xf32>
      %c0_18 = arith.constant 0 : index
      %c1 = arith.constant 1 : index
      %22 = arith.index_cast %9 : i32 to index
      %c0_19 = arith.constant 0 : index
      %23 = vector.load %arg2[%c0_18, %c1, %22, %c0_19] : memref<2x5x16x128xf32, #tpu.memory_space<vmem>>, vector<1x1x8x128xf32>
      %24 = vector.shape_cast %23 : vector<1x1x8x128xf32> to vector<8x128xf32>
      %c0_20 = arith.constant 0 : index
      %c1_21 = arith.constant 1 : index
      %25 = arith.index_cast %9 : i32 to index
      %c0_22 = arith.constant 0 : index
      %26 = vector.load %arg3[%c0_20, %c1_21, %25, %c0_22] : memref<2x5x16x128xf32, #tpu.memory_space<vmem>>, vector<1x1x8x128xf32>
      %27 = vector.shape_cast %26 : vector<1x1x8x128xf32> to vector<8x128xf32>
      %28 = arith.cmpf ogt, %24, %12 : vector<8x128xf32>
      %c1_i32_23 = arith.constant 1 : i32
      %29 = vector.broadcast %c1_i32_23 : i32 to vector<8x128xi32>
      %30 = arith.select %28, %29, %16 : vector<8x128xi1>, vector<8x128xi32>
      %31 = arith.select %28, %24, %12 : vector<8x128xi1>, vector<8x128xf32>
      %32 = arith.cmpf ogt, %27, %15 : vector<8x128xf32>
      %c1_i32_24 = arith.constant 1 : i32
      %33 = vector.broadcast %c1_i32_24 : i32 to vector<8x128xi32>
      %34 = arith.select %32, %33, %17 : vector<8x128xi1>, vector<8x128xi32>
      %35 = arith.select %32, %27, %15 : vector<8x128xi1>, vector<8x128xf32>
      %cst_25 = arith.constant 9.99999993E-9 : f32
      %36 = vector.broadcast %cst_25 : f32 to vector<8x128xf32>
      %37 = arith.addf %24, %36 : vector<8x128xf32>
      %38 = math.log %37 : vector<8x128xf32>
      %39 = arith.mulf %27, %38 : vector<8x128xf32>
      %40 = arith.addf %21, %39 : vector<8x128xf32>
      %c0_26 = arith.constant 0 : index
      %c2 = arith.constant 2 : index
      %41 = arith.index_cast %9 : i32 to index
      %c0_27 = arith.constant 0 : index
      %42 = vector.load %arg2[%c0_26, %c2, %41, %c0_27] : memref<2x5x16x128xf32, #tpu.memory_space<vmem>>, vector<1x1x8x128xf32>
      %43 = vector.shape_cast %42 : vector<1x1x8x128xf32> to vector<8x128xf32>
      %c0_28 = arith.constant 0 : index
      %c2_29 = arith.constant 2 : index
      %44 = arith.index_cast %9 : i32 to index
      %c0_30 = arith.constant 0 : index
      %45 = vector.load %arg3[%c0_28, %c2_29, %44, %c0_30] : memref<2x5x16x128xf32, #tpu.memory_space<vmem>>, vector<1x1x8x128xf32>
      %46 = vector.shape_cast %45 : vector<1x1x8x128xf32> to vector<8x128xf32>
      %47 = arith.cmpf ogt, %43, %31 : vector<8x128xf32>
      %c2_i32_31 = arith.constant 2 : i32
      %48 = vector.broadcast %c2_i32_31 : i32 to vector<8x128xi32>
      %49 = arith.select %47, %48, %30 : vector<8x128xi1>, vector<8x128xi32>
      %50 = arith.select %47, %43, %31 : vector<8x128xi1>, vector<8x128xf32>
      %51 = arith.cmpf ogt, %46, %35 : vector<8x128xf32>
      %c2_i32_32 = arith.constant 2 : i32
      %52 = vector.broadcast %c2_i32_32 : i32 to vector<8x128xi32>
      %53 = arith.select %51, %52, %34 : vector<8x128xi1>, vector<8x128xi32>
      %54 = arith.select %51, %46, %35 : vector<8x128xi1>, vector<8x128xf32>
      %cst_33 = arith.constant 9.99999993E-9 : f32
      %55 = vector.broadcast %cst_33 : f32 to vector<8x128xf32>
      %56 = arith.addf %43, %55 : vector<8x128xf32>
      %57 = math.log %56 : vector<8x128xf32>
      %58 = arith.mulf %46, %57 : vector<8x128xf32>
      %59 = arith.addf %40, %58 : vector<8x128xf32>
      %c0_34 = arith.constant 0 : index
      %c3 = arith.constant 3 : index
      %60 = arith.index_cast %9 : i32 to index
      %c0_35 = arith.constant 0 : index
      %61 = vector.load %arg2[%c0_34, %c3, %60, %c0_35] : memref<2x5x16x128xf32, #tpu.memory_space<vmem>>, vector<1x1x8x128xf32>
      %62 = vector.shape_cast %61 : vector<1x1x8x128xf32> to vector<8x128xf32>
      %c0_36 = arith.constant 0 : index
      %c3_37 = arith.constant 3 : index
      %63 = arith.index_cast %9 : i32 to index
      %c0_38 = arith.constant 0 : index
      %64 = vector.load %arg3[%c0_36, %c3_37, %63, %c0_38] : memref<2x5x16x128xf32, #tpu.memory_space<vmem>>, vector<1x1x8x128xf32>
      %65 = vector.shape_cast %64 : vector<1x1x8x128xf32> to vector<8x128xf32>
      %66 = arith.cmpf ogt, %62, %50 : vector<8x128xf32>
      %c3_i32 = arith.constant 3 : i32
      %67 = vector.broadcast %c3_i32 : i32 to vector<8x128xi32>
      %68 = arith.select %66, %67, %49 : vector<8x128xi1>, vector<8x128xi32>
      %69 = arith.select %66, %62, %50 : vector<8x128xi1>, vector<8x128xf32>
      %70 = arith.cmpf ogt, %65, %54 : vector<8x128xf32>
      %c3_i32_39 = arith.constant 3 : i32
      %71 = vector.broadcast %c3_i32_39 : i32 to vector<8x128xi32>
      %72 = arith.select %70, %71, %53 : vector<8x128xi1>, vector<8x128xi32>
      %73 = arith.select %70, %65, %54 : vector<8x128xi1>, vector<8x128xf32>
      %cst_40 = arith.constant 9.99999993E-9 : f32
      %74 = vector.broadcast %cst_40 : f32 to vector<8x128xf32>
      %75 = arith.addf %62, %74 : vector<8x128xf32>
      %76 = math.log %75 : vector<8x128xf32>
      %77 = arith.mulf %65, %76 : vector<8x128xf32>
      %78 = arith.addf %59, %77 : vector<8x128xf32>
      %c0_41 = arith.constant 0 : index
      %c4 = arith.constant 4 : index
      %79 = arith.index_cast %9 : i32 to index
      %c0_42 = arith.constant 0 : index
      %80 = vector.load %arg2[%c0_41, %c4, %79, %c0_42] : memref<2x5x16x128xf32, #tpu.memory_space<vmem>>, vector<1x1x8x128xf32>
      %81 = vector.shape_cast %80 : vector<1x1x8x128xf32> to vector<8x128xf32>
      %c0_43 = arith.constant 0 : index
      %c4_44 = arith.constant 4 : index
      %82 = arith.index_cast %9 : i32 to index
      %c0_45 = arith.constant 0 : index
      %83 = vector.load %arg3[%c0_43, %c4_44, %82, %c0_45] : memref<2x5x16x128xf32, #tpu.memory_space<vmem>>, vector<1x1x8x128xf32>
      %84 = vector.shape_cast %83 : vector<1x1x8x128xf32> to vector<8x128xf32>
      %85 = arith.cmpf ogt, %81, %69 : vector<8x128xf32>
      %c4_i32 = arith.constant 4 : i32
      %86 = vector.broadcast %c4_i32 : i32 to vector<8x128xi32>
      %87 = arith.select %85, %86, %68 : vector<8x128xi1>, vector<8x128xi32>
      %88 = arith.cmpf ogt, %84, %73 : vector<8x128xf32>
      %c4_i32_46 = arith.constant 4 : i32
      %89 = vector.broadcast %c4_i32_46 : i32 to vector<8x128xi32>
      %90 = arith.select %88, %89, %72 : vector<8x128xi1>, vector<8x128xi32>
      %cst_47 = arith.constant 9.99999993E-9 : f32
      %91 = vector.broadcast %cst_47 : f32 to vector<8x128xf32>
      %92 = arith.addf %81, %91 : vector<8x128xf32>
      %93 = math.log %92 : vector<8x128xf32>
      %94 = arith.mulf %84, %93 : vector<8x128xf32>
      %95 = arith.addf %78, %94 : vector<8x128xf32>
      %cst_48 = arith.constant 0.000000e+00 : f32
      %96 = vector.broadcast %cst_48 : f32 to vector<8x128xf32>
      %c1_i32_49 = arith.constant 1 : i32
      %97 = vector.broadcast %c1_i32_49 : i32 to vector<8x128xi32>
      %98 = arith.cmpi eq, %87, %97 : vector<8x128xi32>
      %c0_i32_50 = arith.constant 0 : i32
      %99 = arith.addi %0, %c0_i32_50 : i32
      %c5_i32 = arith.constant 5 : i32
      %100 = arith.muli %99, %c5_i32 : i32
      %c1_i32_51 = arith.constant 1 : i32
      %101 = arith.addi %100, %c1_i32_51 : i32
      %102 = arith.index_cast %101 : i32 to index
      %103 = memref.load %arg5[%102] : memref<10xf32, #tpu.memory_space<smem>>
      %cst_52 = arith.constant 0.000000e+00 : f32
      %104 = vector.broadcast %103 : f32 to vector<8x128xf32>
      %105 = vector.broadcast %cst_52 : f32 to vector<8x128xf32>
      %106 = arith.select %98, %104, %105 : vector<8x128xi1>, vector<8x128xf32>
      %107 = arith.addf %96, %106 : vector<8x128xf32>
      %c2_i32_53 = arith.constant 2 : i32
      %108 = vector.broadcast %c2_i32_53 : i32 to vector<8x128xi32>
      %109 = arith.cmpi eq, %87, %108 : vector<8x128xi32>
      %c0_i32_54 = arith.constant 0 : i32
      %110 = arith.addi %0, %c0_i32_54 : i32
      %c5_i32_55 = arith.constant 5 : i32
      %111 = arith.muli %110, %c5_i32_55 : i32
      %c2_i32_56 = arith.constant 2 : i32
      %112 = arith.addi %111, %c2_i32_56 : i32
      %113 = arith.index_cast %112 : i32 to index
      %114 = memref.load %arg5[%113] : memref<10xf32, #tpu.memory_space<smem>>
      %cst_57 = arith.constant 0.000000e+00 : f32
      %115 = vector.broadcast %114 : f32 to vector<8x128xf32>
      %116 = vector.broadcast %cst_57 : f32 to vector<8x128xf32>
      %117 = arith.select %109, %115, %116 : vector<8x128xi1>, vector<8x128xf32>
      %118 = arith.addf %107, %117 : vector<8x128xf32>
      %c3_i32_58 = arith.constant 3 : i32
      %119 = vector.broadcast %c3_i32_58 : i32 to vector<8x128xi32>
      %120 = arith.cmpi eq, %87, %119 : vector<8x128xi32>
      %c0_i32_59 = arith.constant 0 : i32
      %121 = arith.addi %0, %c0_i32_59 : i32
      %c5_i32_60 = arith.constant 5 : i32
      %122 = arith.muli %121, %c5_i32_60 : i32
      %c3_i32_61 = arith.constant 3 : i32
      %123 = arith.addi %122, %c3_i32_61 : i32
      %124 = arith.index_cast %123 : i32 to index
      %125 = memref.load %arg5[%124] : memref<10xf32, #tpu.memory_space<smem>>
      %cst_62 = arith.constant 0.000000e+00 : f32
      %126 = vector.broadcast %125 : f32 to vector<8x128xf32>
      %127 = vector.broadcast %cst_62 : f32 to vector<8x128xf32>
      %128 = arith.select %120, %126, %127 : vector<8x128xi1>, vector<8x128xf32>
      %129 = arith.addf %118, %128 : vector<8x128xf32>
      %c4_i32_63 = arith.constant 4 : i32
      %130 = vector.broadcast %c4_i32_63 : i32 to vector<8x128xi32>
      %131 = arith.cmpi eq, %87, %130 : vector<8x128xi32>
      %c0_i32_64 = arith.constant 0 : i32
      %132 = arith.addi %0, %c0_i32_64 : i32
      %c5_i32_65 = arith.constant 5 : i32
      %133 = arith.muli %132, %c5_i32_65 : i32
      %c4_i32_66 = arith.constant 4 : i32
      %134 = arith.addi %133, %c4_i32_66 : i32
      %135 = arith.index_cast %134 : i32 to index
      %136 = memref.load %arg5[%135] : memref<10xf32, #tpu.memory_space<smem>>
      %cst_67 = arith.constant 0.000000e+00 : f32
      %137 = vector.broadcast %136 : f32 to vector<8x128xf32>
      %138 = vector.broadcast %cst_67 : f32 to vector<8x128xf32>
      %139 = arith.select %131, %137, %138 : vector<8x128xi1>, vector<8x128xf32>
      %140 = arith.addf %129, %139 : vector<8x128xf32>
      %c0_68 = arith.constant 0 : index
      %c0_69 = arith.constant 0 : index
      %141 = arith.index_cast %9 : i32 to index
      %c0_70 = arith.constant 0 : index
      %142 = vector.load %arg4[%c0_68, %c0_69, %141, %c0_70] : memref<2x1x16x128xf32, #tpu.memory_space<vmem>>, vector<1x1x8x128xf32>
      %143 = vector.shape_cast %142 : vector<1x1x8x128xf32> to vector<8x128xf32>
      %144 = arith.cmpi ne, %87, %90 : vector<8x128xi32>
      %cst_71 = arith.constant 0.000000e+00 : f32
      %145 = vector.broadcast %cst_71 : f32 to vector<8x128xf32>
      %146 = arith.cmpf ogt, %140, %145 : vector<8x128xf32>
      %147 = arith.andi %144, %146 : vector<8x128xi1>
      %c0_i32_72 = arith.constant 0 : i32
      %148 = arith.addi %0, %c0_i32_72 : i32
      %149 = arith.index_cast %148 : i32 to index
      %150 = memref.load %arg6[%149] : memref<2xf32, #tpu.memory_space<smem>>
      %151 = vector.broadcast %150 : f32 to vector<8x128xf32>
      %152 = arith.mulf %151, %140 : vector<8x128xf32>
      %153 = arith.select %147, %152, %143 : vector<8x128xi1>, vector<8x128xf32>
      %154 = arith.mulf %153, %95 : vector<8x128xf32>
      %cst_73 = arith.constant 0.000000e+00 : f32
      %155 = vector.broadcast %cst_73 : f32 to vector<8x128xf32>
      %156 = arith.subf %155, %154 : vector<8x128xf32>
      %157 = arith.addf %arg9, %156 : vector<8x128xf32>
      scf.yield %157 : vector<8x128xf32>
    }
    %c2_i32_1 = arith.constant 2 : i32
    %c0_i32_2 = arith.constant 0 : i32
    %c2_i32_3 = arith.constant 2 : i32
    %4 = arith.addi %c0_i32_2, %c2_i32_3 : i32
    %c1_i32_4 = arith.constant 1 : i32
    %5 = scf.for %arg8 = %c0_i32_2 to %4 step %c1_i32_4 iter_args(%arg9 = %3) -> (vector<8x128xf32>)  : i32 {
      %c8_i32 = arith.constant 8 : i32
      %8 = arith.muli %arg8, %c8_i32 : i32
      %9 = tpu.assume_multiple %8, 8 : i32
      %c1 = arith.constant 1 : index
      %c0_9 = arith.constant 0 : index
      %10 = arith.index_cast %9 : i32 to index
      %c0_10 = arith.constant 0 : index
      %11 = vector.load %arg2[%c1, %c0_9, %10, %c0_10] : memref<2x5x16x128xf32, #tpu.memory_space<vmem>>, vector<1x1x8x128xf32>
      %12 = vector.shape_cast %11 : vector<1x1x8x128xf32> to vector<8x128xf32>
      %c1_11 = arith.constant 1 : index
      %c0_12 = arith.constant 0 : index
      %13 = arith.index_cast %9 : i32 to index
      %c0_13 = arith.constant 0 : index
      %14 = vector.load %arg3[%c1_11, %c0_12, %13, %c0_13] : memref<2x5x16x128xf32, #tpu.memory_space<vmem>>, vector<1x1x8x128xf32>
      %15 = vector.shape_cast %14 : vector<1x1x8x128xf32> to vector<8x128xf32>
      %c0_i32_14 = arith.constant 0 : i32
      %16 = vector.broadcast %c0_i32_14 : i32 to vector<8x128xi32>
      %c0_i32_15 = arith.constant 0 : i32
      %17 = vector.broadcast %c0_i32_15 : i32 to vector<8x128xi32>
      %cst_16 = arith.constant 9.99999993E-9 : f32
      %18 = vector.broadcast %cst_16 : f32 to vector<8x128xf32>
      %19 = arith.addf %12, %18 : vector<8x128xf32>
      %20 = math.log %19 : vector<8x128xf32>
      %21 = arith.mulf %15, %20 : vector<8x128xf32>
      %c1_17 = arith.constant 1 : index
      %c1_18 = arith.constant 1 : index
      %22 = arith.index_cast %9 : i32 to index
      %c0_19 = arith.constant 0 : index
      %23 = vector.load %arg2[%c1_17, %c1_18, %22, %c0_19] : memref<2x5x16x128xf32, #tpu.memory_space<vmem>>, vector<1x1x8x128xf32>
      %24 = vector.shape_cast %23 : vector<1x1x8x128xf32> to vector<8x128xf32>
      %c1_20 = arith.constant 1 : index
      %c1_21 = arith.constant 1 : index
      %25 = arith.index_cast %9 : i32 to index
      %c0_22 = arith.constant 0 : index
      %26 = vector.load %arg3[%c1_20, %c1_21, %25, %c0_22] : memref<2x5x16x128xf32, #tpu.memory_space<vmem>>, vector<1x1x8x128xf32>
      %27 = vector.shape_cast %26 : vector<1x1x8x128xf32> to vector<8x128xf32>
      %28 = arith.cmpf ogt, %24, %12 : vector<8x128xf32>
      %c1_i32_23 = arith.constant 1 : i32
      %29 = vector.broadcast %c1_i32_23 : i32 to vector<8x128xi32>
      %30 = arith.select %28, %29, %16 : vector<8x128xi1>, vector<8x128xi32>
      %31 = arith.select %28, %24, %12 : vector<8x128xi1>, vector<8x128xf32>
      %32 = arith.cmpf ogt, %27, %15 : vector<8x128xf32>
      %c1_i32_24 = arith.constant 1 : i32
      %33 = vector.broadcast %c1_i32_24 : i32 to vector<8x128xi32>
      %34 = arith.select %32, %33, %17 : vector<8x128xi1>, vector<8x128xi32>
      %35 = arith.select %32, %27, %15 : vector<8x128xi1>, vector<8x128xf32>
      %cst_25 = arith.constant 9.99999993E-9 : f32
      %36 = vector.broadcast %cst_25 : f32 to vector<8x128xf32>
      %37 = arith.addf %24, %36 : vector<8x128xf32>
      %38 = math.log %37 : vector<8x128xf32>
      %39 = arith.mulf %27, %38 : vector<8x128xf32>
      %40 = arith.addf %21, %39 : vector<8x128xf32>
      %c1_26 = arith.constant 1 : index
      %c2 = arith.constant 2 : index
      %41 = arith.index_cast %9 : i32 to index
      %c0_27 = arith.constant 0 : index
      %42 = vector.load %arg2[%c1_26, %c2, %41, %c0_27] : memref<2x5x16x128xf32, #tpu.memory_space<vmem>>, vector<1x1x8x128xf32>
      %43 = vector.shape_cast %42 : vector<1x1x8x128xf32> to vector<8x128xf32>
      %c1_28 = arith.constant 1 : index
      %c2_29 = arith.constant 2 : index
      %44 = arith.index_cast %9 : i32 to index
      %c0_30 = arith.constant 0 : index
      %45 = vector.load %arg3[%c1_28, %c2_29, %44, %c0_30] : memref<2x5x16x128xf32, #tpu.memory_space<vmem>>, vector<1x1x8x128xf32>
      %46 = vector.shape_cast %45 : vector<1x1x8x128xf32> to vector<8x128xf32>
      %47 = arith.cmpf ogt, %43, %31 : vector<8x128xf32>
      %c2_i32_31 = arith.constant 2 : i32
      %48 = vector.broadcast %c2_i32_31 : i32 to vector<8x128xi32>
      %49 = arith.select %47, %48, %30 : vector<8x128xi1>, vector<8x128xi32>
      %50 = arith.select %47, %43, %31 : vector<8x128xi1>, vector<8x128xf32>
      %51 = arith.cmpf ogt, %46, %35 : vector<8x128xf32>
      %c2_i32_32 = arith.constant 2 : i32
      %52 = vector.broadcast %c2_i32_32 : i32 to vector<8x128xi32>
      %53 = arith.select %51, %52, %34 : vector<8x128xi1>, vector<8x128xi32>
      %54 = arith.select %51, %46, %35 : vector<8x128xi1>, vector<8x128xf32>
      %cst_33 = arith.constant 9.99999993E-9 : f32
      %55 = vector.broadcast %cst_33 : f32 to vector<8x128xf32>
      %56 = arith.addf %43, %55 : vector<8x128xf32>
      %57 = math.log %56 : vector<8x128xf32>
      %58 = arith.mulf %46, %57 : vector<8x128xf32>
      %59 = arith.addf %40, %58 : vector<8x128xf32>
      %c1_34 = arith.constant 1 : index
      %c3 = arith.constant 3 : index
      %60 = arith.index_cast %9 : i32 to index
      %c0_35 = arith.constant 0 : index
      %61 = vector.load %arg2[%c1_34, %c3, %60, %c0_35] : memref<2x5x16x128xf32, #tpu.memory_space<vmem>>, vector<1x1x8x128xf32>
      %62 = vector.shape_cast %61 : vector<1x1x8x128xf32> to vector<8x128xf32>
      %c1_36 = arith.constant 1 : index
      %c3_37 = arith.constant 3 : index
      %63 = arith.index_cast %9 : i32 to index
      %c0_38 = arith.constant 0 : index
      %64 = vector.load %arg3[%c1_36, %c3_37, %63, %c0_38] : memref<2x5x16x128xf32, #tpu.memory_space<vmem>>, vector<1x1x8x128xf32>
      %65 = vector.shape_cast %64 : vector<1x1x8x128xf32> to vector<8x128xf32>
      %66 = arith.cmpf ogt, %62, %50 : vector<8x128xf32>
      %c3_i32 = arith.constant 3 : i32
      %67 = vector.broadcast %c3_i32 : i32 to vector<8x128xi32>
      %68 = arith.select %66, %67, %49 : vector<8x128xi1>, vector<8x128xi32>
      %69 = arith.select %66, %62, %50 : vector<8x128xi1>, vector<8x128xf32>
      %70 = arith.cmpf ogt, %65, %54 : vector<8x128xf32>
      %c3_i32_39 = arith.constant 3 : i32
      %71 = vector.broadcast %c3_i32_39 : i32 to vector<8x128xi32>
      %72 = arith.select %70, %71, %53 : vector<8x128xi1>, vector<8x128xi32>
      %73 = arith.select %70, %65, %54 : vector<8x128xi1>, vector<8x128xf32>
      %cst_40 = arith.constant 9.99999993E-9 : f32
      %74 = vector.broadcast %cst_40 : f32 to vector<8x128xf32>
      %75 = arith.addf %62, %74 : vector<8x128xf32>
      %76 = math.log %75 : vector<8x128xf32>
      %77 = arith.mulf %65, %76 : vector<8x128xf32>
      %78 = arith.addf %59, %77 : vector<8x128xf32>
      %c1_41 = arith.constant 1 : index
      %c4 = arith.constant 4 : index
      %79 = arith.index_cast %9 : i32 to index
      %c0_42 = arith.constant 0 : index
      %80 = vector.load %arg2[%c1_41, %c4, %79, %c0_42] : memref<2x5x16x128xf32, #tpu.memory_space<vmem>>, vector<1x1x8x128xf32>
      %81 = vector.shape_cast %80 : vector<1x1x8x128xf32> to vector<8x128xf32>
      %c1_43 = arith.constant 1 : index
      %c4_44 = arith.constant 4 : index
      %82 = arith.index_cast %9 : i32 to index
      %c0_45 = arith.constant 0 : index
      %83 = vector.load %arg3[%c1_43, %c4_44, %82, %c0_45] : memref<2x5x16x128xf32, #tpu.memory_space<vmem>>, vector<1x1x8x128xf32>
      %84 = vector.shape_cast %83 : vector<1x1x8x128xf32> to vector<8x128xf32>
      %85 = arith.cmpf ogt, %81, %69 : vector<8x128xf32>
      %c4_i32 = arith.constant 4 : i32
      %86 = vector.broadcast %c4_i32 : i32 to vector<8x128xi32>
      %87 = arith.select %85, %86, %68 : vector<8x128xi1>, vector<8x128xi32>
      %88 = arith.cmpf ogt, %84, %73 : vector<8x128xf32>
      %c4_i32_46 = arith.constant 4 : i32
      %89 = vector.broadcast %c4_i32_46 : i32 to vector<8x128xi32>
      %90 = arith.select %88, %89, %72 : vector<8x128xi1>, vector<8x128xi32>
      %cst_47 = arith.constant 9.99999993E-9 : f32
      %91 = vector.broadcast %cst_47 : f32 to vector<8x128xf32>
      %92 = arith.addf %81, %91 : vector<8x128xf32>
      %93 = math.log %92 : vector<8x128xf32>
      %94 = arith.mulf %84, %93 : vector<8x128xf32>
      %95 = arith.addf %78, %94 : vector<8x128xf32>
      %cst_48 = arith.constant 0.000000e+00 : f32
      %96 = vector.broadcast %cst_48 : f32 to vector<8x128xf32>
      %c1_i32_49 = arith.constant 1 : i32
      %97 = vector.broadcast %c1_i32_49 : i32 to vector<8x128xi32>
      %98 = arith.cmpi eq, %87, %97 : vector<8x128xi32>
      %c1_i32_50 = arith.constant 1 : i32
      %99 = arith.addi %0, %c1_i32_50 : i32
      %c5_i32 = arith.constant 5 : i32
      %100 = arith.muli %99, %c5_i32 : i32
      %c1_i32_51 = arith.constant 1 : i32
      %101 = arith.addi %100, %c1_i32_51 : i32
      %102 = arith.index_cast %101 : i32 to index
      %103 = memref.load %arg5[%102] : memref<10xf32, #tpu.memory_space<smem>>
      %cst_52 = arith.constant 0.000000e+00 : f32
      %104 = vector.broadcast %103 : f32 to vector<8x128xf32>
      %105 = vector.broadcast %cst_52 : f32 to vector<8x128xf32>
      %106 = arith.select %98, %104, %105 : vector<8x128xi1>, vector<8x128xf32>
      %107 = arith.addf %96, %106 : vector<8x128xf32>
      %c2_i32_53 = arith.constant 2 : i32
      %108 = vector.broadcast %c2_i32_53 : i32 to vector<8x128xi32>
      %109 = arith.cmpi eq, %87, %108 : vector<8x128xi32>
      %c1_i32_54 = arith.constant 1 : i32
      %110 = arith.addi %0, %c1_i32_54 : i32
      %c5_i32_55 = arith.constant 5 : i32
      %111 = arith.muli %110, %c5_i32_55 : i32
      %c2_i32_56 = arith.constant 2 : i32
      %112 = arith.addi %111, %c2_i32_56 : i32
      %113 = arith.index_cast %112 : i32 to index
      %114 = memref.load %arg5[%113] : memref<10xf32, #tpu.memory_space<smem>>
      %cst_57 = arith.constant 0.000000e+00 : f32
      %115 = vector.broadcast %114 : f32 to vector<8x128xf32>
      %116 = vector.broadcast %cst_57 : f32 to vector<8x128xf32>
      %117 = arith.select %109, %115, %116 : vector<8x128xi1>, vector<8x128xf32>
      %118 = arith.addf %107, %117 : vector<8x128xf32>
      %c3_i32_58 = arith.constant 3 : i32
      %119 = vector.broadcast %c3_i32_58 : i32 to vector<8x128xi32>
      %120 = arith.cmpi eq, %87, %119 : vector<8x128xi32>
      %c1_i32_59 = arith.constant 1 : i32
      %121 = arith.addi %0, %c1_i32_59 : i32
      %c5_i32_60 = arith.constant 5 : i32
      %122 = arith.muli %121, %c5_i32_60 : i32
      %c3_i32_61 = arith.constant 3 : i32
      %123 = arith.addi %122, %c3_i32_61 : i32
      %124 = arith.index_cast %123 : i32 to index
      %125 = memref.load %arg5[%124] : memref<10xf32, #tpu.memory_space<smem>>
      %cst_62 = arith.constant 0.000000e+00 : f32
      %126 = vector.broadcast %125 : f32 to vector<8x128xf32>
      %127 = vector.broadcast %cst_62 : f32 to vector<8x128xf32>
      %128 = arith.select %120, %126, %127 : vector<8x128xi1>, vector<8x128xf32>
      %129 = arith.addf %118, %128 : vector<8x128xf32>
      %c4_i32_63 = arith.constant 4 : i32
      %130 = vector.broadcast %c4_i32_63 : i32 to vector<8x128xi32>
      %131 = arith.cmpi eq, %87, %130 : vector<8x128xi32>
      %c1_i32_64 = arith.constant 1 : i32
      %132 = arith.addi %0, %c1_i32_64 : i32
      %c5_i32_65 = arith.constant 5 : i32
      %133 = arith.muli %132, %c5_i32_65 : i32
      %c4_i32_66 = arith.constant 4 : i32
      %134 = arith.addi %133, %c4_i32_66 : i32
      %135 = arith.index_cast %134 : i32 to index
      %136 = memref.load %arg5[%135] : memref<10xf32, #tpu.memory_space<smem>>
      %cst_67 = arith.constant 0.000000e+00 : f32
      %137 = vector.broadcast %136 : f32 to vector<8x128xf32>
      %138 = vector.broadcast %cst_67 : f32 to vector<8x128xf32>
      %139 = arith.select %131, %137, %138 : vector<8x128xi1>, vector<8x128xf32>
      %140 = arith.addf %129, %139 : vector<8x128xf32>
      %c1_68 = arith.constant 1 : index
      %c0_69 = arith.constant 0 : index
      %141 = arith.index_cast %9 : i32 to index
      %c0_70 = arith.constant 0 : index
      %142 = vector.load %arg4[%c1_68, %c0_69, %141, %c0_70] : memref<2x1x16x128xf32, #tpu.memory_space<vmem>>, vector<1x1x8x128xf32>
      %143 = vector.shape_cast %142 : vector<1x1x8x128xf32> to vector<8x128xf32>
      %144 = arith.cmpi ne, %87, %90 : vector<8x128xi32>
      %cst_71 = arith.constant 0.000000e+00 : f32
      %145 = vector.broadcast %cst_71 : f32 to vector<8x128xf32>
      %146 = arith.cmpf ogt, %140, %145 : vector<8x128xf32>
      %147 = arith.andi %144, %146 : vector<8x128xi1>
      %c1_i32_72 = arith.constant 1 : i32
      %148 = arith.addi %0, %c1_i32_72 : i32
      %149 = arith.index_cast %148 : i32 to index
      %150 = memref.load %arg6[%149] : memref<2xf32, #tpu.memory_space<smem>>
      %151 = vector.broadcast %150 : f32 to vector<8x128xf32>
      %152 = arith.mulf %151, %140 : vector<8x128xf32>
      %153 = arith.select %147, %152, %143 : vector<8x128xi1>, vector<8x128xf32>
      %154 = arith.mulf %153, %95 : vector<8x128xf32>
      %cst_73 = arith.constant 0.000000e+00 : f32
      %155 = vector.broadcast %cst_73 : f32 to vector<8x128xf32>
      %156 = arith.subf %155, %154 : vector<8x128xf32>
      %157 = arith.addf %arg9, %156 : vector<8x128xf32>
      scf.yield %157 : vector<8x128xf32>
    }
    %c2_i32_5 = arith.constant 2 : i32
    %6 = vector.shape_cast %5 : vector<8x128xf32> to vector<1x1x8x128xf32>
    %c0 = arith.constant 0 : index
    %c0_6 = arith.constant 0 : index
    %c0_7 = arith.constant 0 : index
    %c0_8 = arith.constant 0 : index
    %7 = vector.load %arg7[%c0, %c0_6, %c0_7, %c0_8] : memref<1x1x8x128xf32, #tpu.memory_space<vmem>>, vector<1x1x8x128xf32>
    tpu.vector_store %arg7[%c0, %c0_6, %c0_7, %c0_8], %6 {strides = array<i32>} : memref<1x1x8x128xf32, #tpu.memory_space<vmem>>, vector<1x1x8x128xf32>,
    return
  }
  func.func @transform_0(%arg0: i32, %arg1: i32) -> (i32, i32, i32, i32) {
    %c0_i32 = arith.constant 0 : i32
    %c0_i32_0 = arith.constant 0 : i32
    %c0_i32_1 = arith.constant 0 : i32
    return %arg0, %c0_i32, %arg1, %c0_i32_0 : i32, i32, i32, i32
  }
  func.func @transform_1(%arg0: i32, %arg1: i32) -> (i32, i32, i32, i32) {
    %c0_i32 = arith.constant 0 : i32
    %c0_i32_0 = arith.constant 0 : i32
    %c0_i32_1 = arith.constant 0 : i32
    return %arg0, %c0_i32, %arg1, %c0_i32_0 : i32, i32, i32, i32
  }
  func.func @transform_2(%arg0: i32, %arg1: i32) -> (i32, i32, i32, i32) {
    %c0_i32 = arith.constant 0 : i32
    %c0_i32_0 = arith.constant 0 : i32
    %c0_i32_1 = arith.constant 0 : i32
    return %arg0, %c0_i32, %arg1, %c0_i32_0 : i32, i32, i32, i32
  }
  func.func @transform_3(%arg0: i32, %arg1: i32) -> i32 {
    %c0_i32 = arith.constant 0 : i32
    %c0_i32_0 = arith.constant 0 : i32
    return %c0_i32 : i32
  }
  func.func @transform_4(%arg0: i32, %arg1: i32) -> i32 {
    %c0_i32 = arith.constant 0 : i32
    %c0_i32_0 = arith.constant 0 : i32
    return %c0_i32 : i32
  }
  func.func @transform_5(%arg0: i32, %arg1: i32) -> (i32, i32, i32, i32) {
    %c0_i32 = arith.constant 0 : i32
    %c0_i32_0 = arith.constant 0 : i32
    %c0_i32_1 = arith.constant 0 : i32
    return %arg0, %arg1, %c0_i32, %c0_i32_0 : i32, i32, i32, i32
  }
}

</mosaic_0001>

<llo_original>
// kernel: tpu_custom_call.1
$region0: #{tpu_custom_call.1}
  #allocation0 [shape = 'u32[]', space=smem, size = 0x4, offset = 0x4, fixed_abs, tag = 'smem constant byte address 0x4 - core index']
  #allocation1 [shape = 'u32[144,128]{1,0:T(1,128)}', space=vmem, size = 0x12000, scoped, tag = 'internal scratch']
  %s0 = inlined_call_operand.hbm [shape: f32[2,5,16,128], index: 0, kind: input, shape index: {}]
  %s1 = inlined_call_operand.hbm [shape: f32[2,5,16,128], index: 1, kind: input, shape index: {}]
  %s2 = inlined_call_operand.hbm [shape: f32[2,1,16,128], index: 2, kind: input, shape index: {}]
  %s3 = inlined_call_operand.vmem [shape: f32[10], index: 3, kind: input, shape index: {}]
  %s4 = inlined_call_operand.vmem [shape: f32[2], index: 4, kind: input, shape index: {}]
  %s5 = inlined_call_operand.hbm [shape: f32[1,1,8,128], index: 5, kind: output, shape index: {}]
  %s6 = sld [smem:[#allocation0]]
  $region64: #{tpu_custom_call.1} parent=0
    _
  %s8 = ssub.s32 1, %s6
  %s9 = scalar_select 0, %s8, %s6
  $region1: #{tpu_custom_call.1} parent=0
    #allocation2 [shape = 'u8[81920]{0}', space=vmem, size = 0x14000, scoped, tag = 'input window, operand 0, single buffered']
    #allocation3 [shape = 's32[1]{0}', space=sflag, size = 0x4, scoped, tag = 'scoped memory for tpu_custom_call.1']
    #allocation4 [shape = 's32[1]{0}', space=sflag, size = 0x4, scoped, tag = 'scoped memory for tpu_custom_call.1']
    #allocation5 [shape = 's32[1]{0}', space=sflag, size = 0x4, scoped, tag = 'scoped memory for tpu_custom_call.1']
    #allocation6 [shape = 'u8[81920]{0}', space=vmem, size = 0x14000, scoped, tag = 'input window, operand 1, single buffered']
    #allocation7 [shape = 's32[1]{0}', space=sflag, size = 0x4, scoped, tag = 'scoped memory for tpu_custom_call.1']
    #allocation8 [shape = 'u8[16384]{0}', space=vmem, size = 0x4000, scoped, tag = 'input window, operand 2, single buffered']
    #allocation9 [shape = 'u8[512]{0}', space=smem, size = 0x200, scoped, tag = 'input window, operand 3, single buffered']
    #allocation10 [shape = 'u8[512]{0}', space=smem, size = 0x200, scoped, tag = 'input window, operand 4, single buffered']
    #allocation11 [shape = 's32[1]{0}', space=sflag, size = 0x4, scoped, tag = 'scoped memory for tpu_custom_call.1']
    #allocation12 [shape = 'u8[4096]{0}', space=vmem, size = 0x1000, scoped, tag = 'output window, operand 0, single buffered']
    %10 = vsyncpa [#allocation3], 0
    %11 = vsyncpa [#allocation7], 0
    %12 = vsyncpa [#allocation5], 0
    %13 = vsyncpa [#allocation11], 0
    %14 = vsyncpa [#allocation4], 0
    // Predicated region
    $region2: #{tpu_custom_call.1} parent=1 // pred_check
      _
    $region3: #{tpu_custom_call.1} parent=1 // pred_check_branch
      %16 = sbr.rel (0) target = $region5
    $region4: #{tpu_custom_call.1} parent=1 // pred_region
      %s18 = ssub.s32 2560, 2560
      %19 = vsyncadd [#allocation3], %s18
      %s20 = sshll.u32 [#allocation2], 4
      %s21 = int_to_ptr.vmem [resolvable:$true] %s20
      %26 = dma.hbm_to_vmem [thread:$0]  %s0, 2560, %s21, [#allocation3], 128, 128, 8
    $region5: #{tpu_custom_call.1} parent=1 // pred_fallthru
      _
    // Predicated region
    $region6: #{tpu_custom_call.1} parent=1 // pred_check
      _
    $region7: #{tpu_custom_call.1} parent=1 // pred_check_branch
      %28 = sbr.rel (0) target = $region9
    $region8: #{tpu_custom_call.1} parent=1 // pred_region
      %s30 = ssub.s32 2560, 2560
      %31 = vsyncadd [#allocation7], %s30
      %s32 = sshll.u32 [#allocation6], 4
      %s33 = int_to_ptr.vmem [resolvable:$true] %s32
      %38 = dma.hbm_to_vmem [thread:$0]  %s1, 2560, %s33, [#allocation7], 128, 128, 8
    $region9: #{tpu_custom_call.1} parent=1 // pred_fallthru
      _
    // Predicated region
    $region10: #{tpu_custom_call.1} parent=1 // pred_check
      _
    $region11: #{tpu_custom_call.1} parent=1 // pred_check_branch
      %40 = sbr.rel (0) target = $region13
    $region12: #{tpu_custom_call.1} parent=1 // pred_region
      %s42 = ssub.s32 512, 512
      %43 = vsyncadd [#allocation7], %s42
      %s44 = sshll.u32 [#allocation8], 4
      %s45 = int_to_ptr.vmem [resolvable:$true] %s44
      %50 = dma.hbm_to_vmem [thread:$0]  %s2, 512, %s45, [#allocation7], 128, 128, 8
    $region13: #{tpu_custom_call.1} parent=1 // pred_fallthru
      _
    // Predicated region
    $region14: #{tpu_custom_call.1} parent=1 // pred_check
      _
    $region15: #{tpu_custom_call.1} parent=1 // pred_check_branch
      %52 = sbr.rel (0) target = $region17
    $region16: #{tpu_custom_call.1} parent=1 // pred_region
      %s54 = ssub.s32 16, 16
      %55 = vsyncadd [#allocation5], %s54
      %s57 = sshll.u32 %s3, 4
      %s58 = int_to_ptr.vmem [resolvable:$true] %s57
      %60 = dma.vmem_to_smem %s58, 16, [#allocation9], [#allocation5]
    $region17: #{tpu_custom_call.1} parent=1 // pred_fallthru
      _
    // Predicated region
    $region18: #{tpu_custom_call.1} parent=1 // pred_check
      _
    $region19: #{tpu_custom_call.1} parent=1 // pred_check_branch
      %62 = sbr.rel (0) target = $region21
    $region20: #{tpu_custom_call.1} parent=1 // pred_region
      %s64 = ssub.s32 16, 16
      %65 = vsyncadd [#allocation11], %s64
      %s67 = sshll.u32 %s4, 4
      %s68 = int_to_ptr.vmem [resolvable:$true] %s67
      %70 = dma.vmem_to_smem %s68, 16, [#allocation10], [#allocation11]
    $region21: #{tpu_custom_call.1} parent=1 // pred_fallthru
      _
    // Predicated region
    $region22: #{tpu_custom_call.1} parent=1 // pred_check
      _
    $region23: #{tpu_custom_call.1} parent=1 // pred_check_branch
      %72 = sbr.rel (0) target = $region25
    $region24: #{tpu_custom_call.1} parent=1 // pred_region
      %73 = dma.done [#allocation3], 2560
    $region25: #{tpu_custom_call.1} parent=1 // pred_fallthru
      _
    // Predicated region
    $region26: #{tpu_custom_call.1} parent=1 // pred_check
      _
    $region27: #{tpu_custom_call.1} parent=1 // pred_check_branch
      %75 = sbr.rel (0) target = $region29
    $region28: #{tpu_custom_call.1} parent=1 // pred_region
      %76 = dma.done [#allocation7], 2560
    $region29: #{tpu_custom_call.1} parent=1 // pred_fallthru
      _
    // Predicated region
    $region30: #{tpu_custom_call.1} parent=1 // pred_check
      _
    $region31: #{tpu_custom_call.1} parent=1 // pred_check_branch
      %78 = sbr.rel (0) target = $region33
    $region32: #{tpu_custom_call.1} parent=1 // pred_region
      %79 = dma.done [#allocation7], 512
    $region33: #{tpu_custom_call.1} parent=1 // pred_fallthru
      _
    // Predicated region
    $region34: #{tpu_custom_call.1} parent=1 // pred_check
      _
    $region35: #{tpu_custom_call.1} parent=1 // pred_check_branch
      %81 = sbr.rel (0) target = $region37
    $region36: #{tpu_custom_call.1} parent=1 // pred_region
      %82 = dma.done [#allocation5], 16
    $region37: #{tpu_custom_call.1} parent=1 // pred_fallthru
      _
    // Predicated region
    $region38: #{tpu_custom_call.1} parent=1 // pred_check
      _
    $region39: #{tpu_custom_call.1} parent=1 // pred_check_branch
      %84 = sbr.rel (0) target = $region41
    $region40: #{tpu_custom_call.1} parent=1 // pred_region
      %85 = dma.done [#allocation11], 16
    $region41: #{tpu_custom_call.1} parent=1 // pred_fallthru
      _
    %86 = sfence
    %s87 = smul.u32 0, 2
    loop: start=0, step=1, limit=2
    $region42: #{tpu_custom_call.1} parent=1 // loop_pre_header
      _
    $region43: #{tpu_custom_call.1} parent=1 // loop_header
      %s89 = sphi 0, %s93
      %p90 = scmp.ge.s32.totalorder %s89, 2
      %v94 = vphi 0.0, %v202
    $region44: #{tpu_custom_call.1} parent=1 // loop_header_branch
      %92 = sbr.rel (%p90) target = $region48
    $region45: #{tpu_custom_call.1} parent=1 // loop_body
      %s95 = smul.u32 %s89, 8
      %s96 = scalar_lea.vmem [#allocation2], %s95
      %v97 = vld [vmem:[%s96] sm:$0xff]
      %s98 = scalar_lea.vmem [#allocation6], %s95
      %v99 = vld [vmem:[%s98] sm:$0xff]
      %v100 = vadd.f32 %v97, 1e-08
      %v101 = vlog2.pop %v100
      %v102 = vmul.f32 %v101, 0.6931472
      %v103 = vmul.f32 %v99, %v102
      %s104 = sadd.s32 %s95, 16
      %s105 = scalar_lea.vmem [#allocation2], %s104
      %v106 = vld [vmem:[%s105] sm:$0xff]
      %s107 = scalar_lea.vmem [#allocation6], %s104
      %v108 = vld [vmem:[%s107] sm:$0xff]
      %vm109 = vcmp.gt.f32.partialorder %v106, %v97
      %v110 = vsel %vm109, 1, 0
      %v111 = vsel %vm109, %v106, %v97
      %vm112 = vcmp.gt.f32.partialorder %v108, %v99
      %v113 = vsel %vm112, 1, 0
      %v114 = vsel %vm112, %v108, %v99
      %v115 = vadd.f32 %v106, 1e-08
      %v116 = vlog2.pop %v115
      %v117 = vmul.f32 %v116, 0.6931472
      %v118 = vmul.f32 %v108, %v117
      %v119 = vadd.f32 %v103, %v118
      %s120 = sadd.s32 %s95, 32
      %s121 = scalar_lea.vmem [#allocation2], %s120
      %v122 = vld [vmem:[%s121] sm:$0xff]
      %s123 = scalar_lea.vmem [#allocation6], %s120
      %v124 = vld [vmem:[%s123] sm:$0xff]
      %vm125 = vcmp.gt.f32.partialorder %v122, %v111
      %v126 = vsel %vm125, 2, %v110
      %v127 = vsel %vm125, %v122, %v111
      %vm128 = vcmp.gt.f32.partialorder %v124, %v114
      %v129 = vsel %vm128, 2, %v113
      %v130 = vsel %vm128, %v124, %v114
      %v131 = vadd.f32 %v122, 1e-08
      %v132 = vlog2.pop %v131
      %v133 = vmul.f32 %v132, 0.6931472
      %v134 = vmul.f32 %v124, %v133
      %v135 = vadd.f32 %v119, %v134
      %s136 = sadd.s32 %s95, 48
      %s137 = scalar_lea.vmem [#allocation2], %s136
      %v138 = vld [vmem:[%s137] sm:$0xff]
      %s139 = scalar_lea.vmem [#allocation6], %s136
      %v140 = vld [vmem:[%s139] sm:$0xff]
      %vm141 = vcmp.gt.f32.partialorder %v138, %v127
      %v142 = vsel %vm141, 3, %v126
      %v143 = vsel %vm141, %v138, %v127
      %vm144 = vcmp.gt.f32.partialorder %v140, %v130
      %v145 = vsel %vm144, 3, %v129
      %v146 = vsel %vm144, %v140, %v130
      %v147 = vadd.f32 %v138, 1e-08
      %v148 = vlog2.pop %v147
      %v149 = vmul.f32 %v148, 0.6931472
      %v150 = vmul.f32 %v140, %v149
      %v151 = vadd.f32 %v135, %v150
      %s152 = sadd.s32 %s95, 64
      %s153 = scalar_lea.vmem [#allocation2], %s152
      %v154 = vld [vmem:[%s153] sm:$0xff]
      %s155 = scalar_lea.vmem [#allocation6], %s152
      %v156 = vld [vmem:[%s155] sm:$0xff]
      %vm157 = vcmp.gt.f32.partialorder %v154, %v143
      %v158 = vsel %vm157, 4, %v142
      %vm159 = vcmp.gt.f32.partialorder %v156, %v146
      %v160 = vsel %vm159, 4, %v145
      %v161 = vadd.f32 %v154, 1e-08
      %v162 = vlog2.pop %v161
      %v163 = vmul.f32 %v162, 0.6931472
      %v164 = vmul.f32 %v156, %v163
      %v165 = vadd.f32 %v151, %v164
      %vm166 = vcmp.eq.s32.totalorder %v158, 1
      %s167 = smul.u32 0, 10
      %s168 = sadd.s32 %s167, 1
      %s169 = sld [smem:[#allocation9 + %s168]]
      %v170 = vstv %s169
      %v171 = vsel %vm166, %v170, 0.0
      %v172 = vadd.f32 %v171, 0.0
      %vm173 = vcmp.eq.s32.totalorder %v158, 2
      %s174 = sadd.s32 %s167, 2
      %s175 = sld [smem:[#allocation9 + %s174]]
      %v176 = vstv %s175
      %v177 = vsel %vm173, %v176, 0.0
      %v178 = vadd.f32 %v172, %v177
      %vm179 = vcmp.eq.s32.totalorder %v158, 3
      %s180 = sadd.s32 %s167, 3
      %s181 = sld [smem:[#allocation9 + %s180]]
      %v182 = vstv %s181
      %v183 = vsel %vm179, %v182, 0.0
      %v184 = vadd.f32 %v178, %v183
      %vm185 = vcmp.eq.s32.totalorder %v158, 4
      %s186 = sadd.s32 %s167, 4
      %s187 = sld [smem:[#allocation9 + %s186]]
      %v188 = vstv %s187
      %v189 = vsel %vm185, %v188, 0.0
      %v190 = vadd.f32 %v184, %v189
      %s191 = scalar_lea.vmem [#allocation8], %s95
      %v192 = vld [vmem:[%s191] sm:$0xff]
      %vm193 = vcmp.ne.s32.totalorder %v158, %v160
      %vm194 = vcmp.gt.f32.partialorder %v190, 0.0
      %vm195 = vmand %vm193, %vm194
      %s196 = sld [smem:[#allocation10 + %s87]]
      %v197 = vstv %s196
      %v198 = vmul.f32 %v197, %v190
      %v199 = vsel %vm195, %v198, %v192
      %v200 = vmul.f32 %v199, %v165
      %v201 = vsub.f32 0.0, %v200
      %v202 = vadd.f32 %v94, %v201
    $region46: #{tpu_custom_call.1} parent=1 // loop_footer
      %s93 = sadd.s32 1, %s89
    $region47: #{tpu_custom_call.1} parent=1 // loop_footer_branch
      %88 = sbr.rel target = $region43
    $region48: #{tpu_custom_call.1} parent=1 // loop_exit
      _
    loop: start=0, step=1, limit=2
    $region49: #{tpu_custom_call.1} parent=1 // loop_pre_header
      _
    $region50: #{tpu_custom_call.1} parent=1 // loop_header
      %s204 = sphi 0, %s208
      %p205 = scmp.ge.s32.totalorder %s204, 2
      %v209 = vphi %v94, %v323
    $region51: #{tpu_custom_call.1} parent=1 // loop_header_branch
      %207 = sbr.rel (%p205) target = $region55
    $region52: #{tpu_custom_call.1} parent=1 // loop_body
      %s210 = smul.u32 %s204, 8
      %s211 = sadd.s32 %s210, 80
      %s212 = scalar_lea.vmem [#allocation2], %s211
      %v213 = vld [vmem:[%s212] sm:$0xff]
      %s214 = scalar_lea.vmem [#allocation6], %s211
      %v215 = vld [vmem:[%s214] sm:$0xff]
      %v216 = vadd.f32 %v213, 1e-08
      %v217 = vlog2.pop %v216
      %v218 = vmul.f32 %v217, 0.6931472
      %v219 = vmul.f32 %v215, %v218
      %s220 = sadd.s32 %s210, 16
      %s221 = sadd.s32 %s220, 80
      %s222 = scalar_lea.vmem [#allocation2], %s221
      %v223 = vld [vmem:[%s222] sm:$0xff]
      %s224 = scalar_lea.vmem [#allocation6], %s221
      %v225 = vld [vmem:[%s224] sm:$0xff]
      %vm226 = vcmp.gt.f32.partialorder %v223, %v213
      %v227 = vsel %vm226, 1, 0
      %v228 = vsel %vm226, %v223, %v213
      %vm229 = vcmp.gt.f32.partialorder %v225, %v215
      %v230 = vsel %vm229, 1, 0
      %v231 = vsel %vm229, %v225, %v215
      %v232 = vadd.f32 %v223, 1e-08
      %v233 = vlog2.pop %v232
      %v234 = vmul.f32 %v233, 0.6931472
      %v235 = vmul.f32 %v225, %v234
      %v236 = vadd.f32 %v219, %v235
      %s237 = sadd.s32 %s210, 32
      %s238 = sadd.s32 %s237, 80
      %s239 = scalar_lea.vmem [#allocation2], %s238
      %v240 = vld [vmem:[%s239] sm:$0xff]
      %s241 = scalar_lea.vmem [#allocation6], %s238
      %v242 = vld [vmem:[%s241] sm:$0xff]
      %vm243 = vcmp.gt.f32.partialorder %v240, %v228
      %v244 = vsel %vm243, 2, %v227
      %v245 = vsel %vm243, %v240, %v228
      %vm246 = vcmp.gt.f32.partialorder %v242, %v231
      %v247 = vsel %vm246, 2, %v230
      %v248 = vsel %vm246, %v242, %v231
      %v249 = vadd.f32 %v240, 1e-08
      %v250 = vlog2.pop %v249
      %v251 = vmul.f32 %v250, 0.6931472
      %v252 = vmul.f32 %v242, %v251
      %v253 = vadd.f32 %v236, %v252
      %s254 = sadd.s32 %s210, 48
      %s255 = sadd.s32 %s254, 80
      %s256 = scalar_lea.vmem [#allocation2], %s255
      %v257 = vld [vmem:[%s256] sm:$0xff]
      %s258 = scalar_lea.vmem [#allocation6], %s255
      %v259 = vld [vmem:[%s258] sm:$0xff]
      %vm260 = vcmp.gt.f32.partialorder %v257, %v245
      %v261 = vsel %vm260, 3, %v244
      %v262 = vsel %vm260, %v257, %v245
      %vm263 = vcmp.gt.f32.partialorder %v259, %v248
      %v264 = vsel %vm263, 3, %v247
      %v265 = vsel %vm263, %v259, %v248
      %v266 = vadd.f32 %v257, 1e-08
      %v267 = vlog2.pop %v266
      %v268 = vmul.f32 %v267, 0.6931472
      %v269 = vmul.f32 %v259, %v268
      %v270 = vadd.f32 %v253, %v269
      %s271 = sadd.s32 %s210, 64
      %s272 = sadd.s32 %s271, 80
      %s273 = scalar_lea.vmem [#allocation2], %s272
      %v274 = vld [vmem:[%s273] sm:$0xff]
      %s275 = scalar_lea.vmem [#allocation6], %s272
      %v276 = vld [vmem:[%s275] sm:$0xff]
      %vm277 = vcmp.gt.f32.partialorder %v274, %v262
      %v278 = vsel %vm277, 4, %v261
      %vm279 = vcmp.gt.f32.partialorder %v276, %v265
      %v280 = vsel %vm279, 4, %v264
      %v281 = vadd.f32 %v274, 1e-08
      %v282 = vlog2.pop %v281
      %v283 = vmul.f32 %v282, 0.6931472
      %v284 = vmul.f32 %v276, %v283
      %v285 = vadd.f32 %v270, %v284
      %vm286 = vcmp.eq.s32.totalorder %v278, 1
      %s287 = sadd.s32 %s87, 1
      %s288 = smul.u32 %s287, 5
      %s289 = sadd.s32 %s288, 1
      %s290 = sld [smem:[#allocation9 + %s289]]
      %v291 = vstv %s290
      %v292 = vsel %vm286, %v291, 0.0
      %v293 = vadd.f32 %v292, 0.0
      %vm294 = vcmp.eq.s32.totalorder %v278, 2
      %s295 = sadd.s32 %s288, 2
      %s296 = sld [smem:[#allocation9 + %s295]]
      %v297 = vstv %s296
      %v298 = vsel %vm294, %v297, 0.0
      %v299 = vadd.f32 %v293, %v298
      %vm300 = vcmp.eq.s32.totalorder %v278, 3
      %s301 = sadd.s32 %s288, 3
      %s302 = sld [smem:[#allocation9 + %s301]]
      %v303 = vstv %s302
      %v304 = vsel %vm300, %v303, 0.0
      %v305 = vadd.f32 %v299, %v304
      %vm306 = vcmp.eq.s32.totalorder %v278, 4
      %s307 = sadd.s32 %s288, 4
      %s308 = sld [smem:[#allocation9 + %s307]]
      %v309 = vstv %s308
      %v310 = vsel %vm306, %v309, 0.0
      %v311 = vadd.f32 %v305, %v310
      %s312 = scalar_lea.vmem [#allocation8], %s220
      %v313 = vld [vmem:[%s312] sm:$0xff]
      %vm314 = vcmp.ne.s32.totalorder %v278, %v280
      %vm315 = vcmp.gt.f32.partialorder %v311, 0.0
      %vm316 = vmand %vm314, %vm315
      %s317 = sld [smem:[#allocation10 + %s287]]
      %v318 = vstv %s317
      %v319 = vmul.f32 %v318, %v311
      %v320 = vsel %vm316, %v319, %v313
      %v321 = vmul.f32 %v320, %v285
      %v322 = vsub.f32 0.0, %v321
      %v323 = vadd.f32 %v209, %v322
    $region53: #{tpu_custom_call.1} parent=1 // loop_footer
      %s208 = sadd.s32 1, %s204
    $region54: #{tpu_custom_call.1} parent=1 // loop_footer_branch
      %203 = sbr.rel target = $region50
    $region55: #{tpu_custom_call.1} parent=1 // loop_exit
      _
    %324 = vst [vmem:[#allocation12] sm:$0xff] %v209
    // Predicated region
    $region56: #{tpu_custom_call.1} parent=1 // pred_check
      _
    $region57: #{tpu_custom_call.1} parent=1 // pred_check_branch
      %326 = sbr.rel (0) target = $region59
    $region58: #{tpu_custom_call.1} parent=1 // pred_region
      %s328 = ssub.s32 128, 128
      %329 = vsyncadd [#allocation4], %s328
      %s331 = sshll.u32 [#allocation12], 4
      %s332 = int_to_ptr.vmem [resolvable:$true] %s331
      %334 = dma.vmem_to_hbm [thread:$0]  %s332, 128, %s5, [#allocation4]
    $region59: #{tpu_custom_call.1} parent=1 // pred_fallthru
      _
    // Predicated region
    $region60: #{tpu_custom_call.1} parent=1 // pred_check
      _
    $region61: #{tpu_custom_call.1} parent=1 // pred_check_branch
      %336 = sbr.rel (0) target = $region63
    $region62: #{tpu_custom_call.1} parent=1 // pred_region
      %337 = dma.done [#allocation4], 128
    $region63: #{tpu_custom_call.1} parent=1 // pred_fallthru
      _
    %338 = vsyncpa [#allocation3], 1
    %339 = vsyncpa [#allocation7], 1
    %340 = vsyncpa [#allocation4], 1
    %341 = vsyncpa [#allocation5], 1
    %342 = vsyncpa [#allocation11], 1

</llo_original>
